<compile_context>
chip_gen: v5e
topology: v5e:2x2
jax: 0.10.0
libtpu: 0.0.40
codegen_flags: <defaults>
</compile_context>

<pallas_src>
import functools

import jax
import jax.numpy as jnp
import numpy as np
from jax.experimental import pallas as pl
from jax.experimental.pallas import tpu as pltpu

C_IN = 16
C_OUT = 68
KERNEL = 2
STRIDE = 1
PADDING = 2
OUTPUT_PADDING = 1
DILATION = 0
NEG_SLOPE = -0.3757

_MAX_BATCH_BLOCK = 8
_VMEM_BUDGET_BYTES = 24 << 20   # headroom under the 32 MiB default scoped VMEM


def _make_kernel(n_total, b_blk, w_in, h_out, w_out):
    """Kernel closure over the static geometry."""

    def kernel(x_ref, w_ref, b_ref, o_ref, xc_ref):
        # x_ref : (b_blk, C_IN, H*W)      flat, UNcropped input slab (lane = H*W)
        # w_ref : (C_OUT, C_IN)           spatially-summed transposed-conv weight
        # b_ref : (C_OUT, 1)              bias
        # o_ref : (b_blk, C_OUT, Ho*Wo)   lane-dense output slab
        # xc_ref: (b_blk, C_IN, Ho*Wo)    VMEM scratch for the cropped activations
        wmat = w_ref[...]
        bias = b_ref[...]
        pid = pl.program_id(0)

        def one_image(b):
            # Gather the cropped rows into a lane-dense (C_IN, Ho*Wo) slab.
            # Output pixel (r, c) reads input pixel (r + PADDING, c + PADDING).
            for r in range(h_out):
                src = (r + PADDING) * w_in + PADDING
                xc_ref[b, :, r * w_out:(r + 1) * w_out] = x_ref[b, :, src:src + w_out]
            l1 = jnp.dot(wmat, xc_ref[b], preferred_element_type=jnp.float32) + bias
            # relu(where(l1 > 0, l1, NEG_SLOPE * l1)) == max(l1, NEG_SLOPE * l1)
            # because NEG_SLOPE < 0 (negative branch is already non-negative).
            o_ref[b] = jnp.maximum(l1, NEG_SLOPE * l1).astype(o_ref.dtype)

        rem = n_total % b_blk
        for b in range(b_blk):
            if rem == 0 or b < rem:
                one_image(b)                       # statically in-bounds for every step
            else:
                # Only the last (partial) batch block can make this index invalid.
                pl.when(pid * b_blk + b < n_total)(functools.partial(one_image, b))

    return kernel


def model_forward(x, weight, bias):
    """x: (N, 16, H, W) float32 NCHW. weight: (Cin, Cout, kH, kW). bias: (Cout,)."""
    n, c_in, h, w = x.shape
    assert c_in == C_IN
    h_out = (h - 1) * STRIDE - 2 * PADDING + DILATION * (KERNEL - 1) + OUTPUT_PADDING + 1
    w_out = (w - 1) * STRIDE - 2 * PADDING + DILATION * (KERNEL - 1) + OUTPUT_PADDING + 1
    assert h_out > 0 and w_out > 0, "input spatial dims too small for these conv params"
    hw_in = h * w
    hw_out = h_out * w_out

    # dilation == 0, stride == 1: all 2x2 taps alias the same input pixel -> sum the
    # kernel spatially; orient so the contraction dim (Cin) is last on the weight.
    w_eff = jnp.sum(weight, axis=(2, 3)).T.astype(jnp.float32)        # (Cout, Cin)
    bias2d = bias.reshape(C_OUT, 1).astype(jnp.float32)               # (Cout, 1)

    # Contiguous flatten of trailing dims: a free view, no crop, no HBM copy.
    x_flat = x.reshape(n, C_IN, hw_in).astype(jnp.float32)            # (N, Cin, H*W)

    # Batch-block sizing: large enough for MB-scale DMAs / per-step overhead amortization,
    # small enough that double-buffered in+out blocks stay well inside scoped VMEM.
    per_image_bytes = 4 * (C_IN * hw_in + C_OUT * hw_out)
    b_blk = max(1, min(_MAX_BATCH_BLOCK, n))
    while b_blk > 1 and 2 * b_blk * per_image_bytes > _VMEM_BUDGET_BYTES:
        b_blk -= 1
    # TODO(synk): for very large H*W (where even b_blk == 1 would exceed VMEM) add a
    # spatial tile grid axis; unnecessary for this module's ~29x21 feature maps.
    num_blocks = -(-n // b_blk)

    kernel = _make_kernel(n, b_blk, w, h_out, w_out)

    cost = pl.CostEstimate(
        flops=2 * n * C_OUT * C_IN * hw_out,
        transcendentals=0,
        bytes_accessed=4 * (n * C_IN * hw_in + n * C_OUT * hw_out
                            + C_OUT * C_IN + C_OUT),
    )

    out3d = pl.pallas_call(
        kernel,
        out_shape=jax.ShapeDtypeStruct((n, C_OUT, hw_out), jnp.float32),
        grid_spec=pltpu.PrefetchScalarGridSpec(
            num_scalar_prefetch=0,
            grid=(num_blocks,),
            in_specs=[
                pl.BlockSpec((b_blk, C_IN, hw_in), lambda i: (i, 0, 0)),  # batch slab
                pl.BlockSpec((C_OUT, C_IN), lambda i: (0, 0)),            # resident weight
                pl.BlockSpec((C_OUT, 1), lambda i: (0, 0)),               # resident bias
            ],
            out_specs=pl.BlockSpec((b_blk, C_OUT, hw_out), lambda i: (i, 0, 0)),
            scratch_shapes=[pltpu.VMEM((b_blk, C_IN, hw_out), jnp.float32)],
        ),
        compiler_params=pltpu.CompilerParams(
            dimension_semantics=("parallel",),
            vmem_limit_bytes=32 * 1024 * 1024,
        ),
        cost_estimate=cost,
    )(x_flat, w_eff, bias2d)

    # Output already in NCHW order: splitting Ho*Wo back is a free contiguous reshape.
    return out3d.reshape(n, C_OUT, h_out, w_out)


def reference_forward(x, weight, bias):
    """Pure-jnp reference of the same math (for sanity check)."""
    n, c_in, h, w = x.shape
    h_out = h - 3
    w_out = w - 3
    w_eff = jnp.sum(weight, axis=(2, 3))  # (Cin, Cout)
    x_crop = x[:, :, PADDING:PADDING + h_out, PADDING:PADDING + w_out]
    l1 = jnp.einsum("nchw,cd->ndhw", x_crop, w_eff) + bias[None, :, None, None]
    l4 = jnp.where(l1 > 0.0, l1, l1 * NEG_SLOPE)
    return jnp.maximum(l4, 0.0)


if __name__ == "__main__":
    key = jax.random.PRNGKey(0)
    kx, kw, kb = jax.random.split(key, 3)

    # Small shapes consistent with the module: N=2, Cin=16, H=19, W=11
    # -> output (2, 68, 16, 8); Ho*Wo = 128 keeps the kernel's lane axis dense.
    x = jax.random.normal(kx, (2, C_IN, 19, 11), dtype=jnp.float32)

    # Deterministic parameter init (PyTorch-style uniform bound).
    fan = C_OUT * KERNEL * KERNEL
    bound = 1.0 / np.sqrt(fan)
    weight = jax.random.uniform(kw, (C_IN, C_OUT, KERNEL, KERNEL),
                                minval=-bound, maxval=bound, dtype=jnp.float32)
    bias = jax.random.uniform(kb, (C_OUT,), minval=-bound, maxval=bound,
                              dtype=jnp.float32)

    out = jax.block_until_ready(jax.jit(model_forward)(x, weight, bias))
    ref = jax.block_until_ready(reference_forward(x, weight, bias))

    assert out.shape == (2, C_OUT, 16, 8), out.shape
    np.testing.assert_allclose(np.asarray(out), np.asarray(ref), rtol=1e-5, atol=1e-5)

    print("KERNEL_OK")
</pallas_src>

<mosaic_0001>
module attributes {stable_mosaic.version = 11 : i64} {
  func.func @kernel(%arg0: i32, %arg1: memref<2x16x209xf32, #tpu.memory_space<vmem>>, %arg2: memref<68x16xf32, #tpu.memory_space<vmem>>, %arg3: memref<68x1xf32, #tpu.memory_space<vmem>>, %arg4: memref<2x68x128xf32, #tpu.memory_space<vmem>>, %arg5: memref<2x16x128xf32, #tpu.memory_space<vmem>>) attributes {dimension_semantics = [#tpu.dimension_semantics<parallel>], iteration_bounds = array<i64: 1>, scalar_prefetch = 0 : i64, scratch_operands = 1 : i64, tpu.core_type = #tpu.core_type<tc>, window_params = [{transform_indices = @transform_0, window_bounds = array<i64: 2, 16, 209>}, {pipeline_mode = #tpu.pipeline_mode<synchronous>, transform_indices = @transform_1, window_bounds = array<i64: 68, 16>}, {pipeline_mode = #tpu.pipeline_mode<synchronous>, transform_indices = @transform_2, window_bounds = array<i64: 68, 1>}, {transform_indices = @transform_3, window_bounds = array<i64: 2, 68, 128>}]} {
    %c0 = arith.constant 0 : index
    %c0_0 = arith.constant 0 : index
    %0 = vector.load %arg2[%c0, %c0_0] : memref<68x16xf32, #tpu.memory_space<vmem>>, vector<68x16xf32>
    %c0_1 = arith.constant 0 : index
    %c0_2 = arith.constant 0 : index
    %1 = vector.load %arg3[%c0_1, %c0_2] : memref<68x1xf32, #tpu.memory_space<vmem>>, vector<68x1xf32>
    %c0_3 = arith.constant 0 : index
    %c0_4 = arith.constant 0 : index
    %c24 = arith.constant 24 : index
    %2 = vector.load %arg1[%c0_3, %c0_4, %c24] : memref<2x16x209xf32, #tpu.memory_space<vmem>>, vector<1x16x8xf32>
    %3 = vector.shape_cast %2 : vector<1x16x8xf32> to vector<16x8xf32>
    %c0_5 = arith.constant 0 : index
    %c0_6 = arith.constant 0 : index
    %c0_7 = arith.constant 0 : index
    %4 = vector.load %arg5[%c0_5, %c0_6, %c0_7] : memref<2x16x128xf32, #tpu.memory_space<vmem>>, vector<1x16x8xf32>
    %5 = vector.shape_cast %4 : vector<1x16x8xf32> to vector<16x8xf32>
    %6 = vector.shape_cast %3 : vector<16x8xf32> to vector<1x16x8xf32>
    tpu.vector_store %arg5[%c0_5, %c0_6, %c0_7], %6 {strides = array<i32>} : memref<2x16x128xf32, #tpu.memory_space<vmem>>, vector<1x16x8xf32>,
    %c0_8 = arith.constant 0 : index
    %c0_9 = arith.constant 0 : index
    %c35 = arith.constant 35 : index
    %7 = vector.load %arg1[%c0_8, %c0_9, %c35] : memref<2x16x209xf32, #tpu.memory_space<vmem>>, vector<1x16x8xf32>
    %8 = vector.shape_cast %7 : vector<1x16x8xf32> to vector<16x8xf32>
    %c0_10 = arith.constant 0 : index
    %c0_11 = arith.constant 0 : index
    %c8 = arith.constant 8 : index
    %9 = vector.load %arg5[%c0_10, %c0_11, %c8] : memref<2x16x128xf32, #tpu.memory_space<vmem>>, vector<1x16x8xf32>
    %10 = vector.shape_cast %9 : vector<1x16x8xf32> to vector<16x8xf32>
    %11 = vector.shape_cast %8 : vector<16x8xf32> to vector<1x16x8xf32>
    tpu.vector_store %arg5[%c0_10, %c0_11, %c8], %11 {strides = array<i32>} : memref<2x16x128xf32, #tpu.memory_space<vmem>>, vector<1x16x8xf32>,
    %c0_12 = arith.constant 0 : index
    %c0_13 = arith.constant 0 : index
    %c46 = arith.constant 46 : index
    %12 = vector.load %arg1[%c0_12, %c0_13, %c46] : memref<2x16x209xf32, #tpu.memory_space<vmem>>, vector<1x16x8xf32>
    %13 = vector.shape_cast %12 : vector<1x16x8xf32> to vector<16x8xf32>
    %c0_14 = arith.constant 0 : index
    %c0_15 = arith.constant 0 : index
    %c16 = arith.constant 16 : index
    %14 = vector.load %arg5[%c0_14, %c0_15, %c16] : memref<2x16x128xf32, #tpu.memory_space<vmem>>, vector<1x16x8xf32>
    %15 = vector.shape_cast %14 : vector<1x16x8xf32> to vector<16x8xf32>
    %16 = vector.shape_cast %13 : vector<16x8xf32> to vector<1x16x8xf32>
    tpu.vector_store %arg5[%c0_14, %c0_15, %c16], %16 {strides = array<i32>} : memref<2x16x128xf32, #tpu.memory_space<vmem>>, vector<1x16x8xf32>,
    %c0_16 = arith.constant 0 : index
    %c0_17 = arith.constant 0 : index
    %c57 = arith.constant 57 : index
    %17 = vector.load %arg1[%c0_16, %c0_17, %c57] : memref<2x16x209xf32, #tpu.memory_space<vmem>>, vector<1x16x8xf32>
    %18 = vector.shape_cast %17 : vector<1x16x8xf32> to vector<16x8xf32>
    %c0_18 = arith.constant 0 : index
    %c0_19 = arith.constant 0 : index
    %c24_20 = arith.constant 24 : index
    %19 = vector.load %arg5[%c0_18, %c0_19, %c24_20] : memref<2x16x128xf32, #tpu.memory_space<vmem>>, vector<1x16x8xf32>
    %20 = vector.shape_cast %19 : vector<1x16x8xf32> to vector<16x8xf32>
    %21 = vector.shape_cast %18 : vector<16x8xf32> to vector<1x16x8xf32>
    tpu.vector_store %arg5[%c0_18, %c0_19, %c24_20], %21 {strides = array<i32>} : memref<2x16x128xf32, #tpu.memory_space<vmem>>, vector<1x16x8xf32>,
    %c0_21 = arith.constant 0 : index
    %c0_22 = arith.constant 0 : index
    %c68 = arith.constant 68 : index
    %22 = vector.load %arg1[%c0_21, %c0_22, %c68] : memref<2x16x209xf32, #tpu.memory_space<vmem>>, vector<1x16x8xf32>
    %23 = vector.shape_cast %22 : vector<1x16x8xf32> to vector<16x8xf32>
    %c0_23 = arith.constant 0 : index
    %c0_24 = arith.constant 0 : index
    %c32 = arith.constant 32 : index
    %24 = vector.load %arg5[%c0_23, %c0_24, %c32] : memref<2x16x128xf32, #tpu.memory_space<vmem>>, vector<1x16x8xf32>
    %25 = vector.shape_cast %24 : vector<1x16x8xf32> to vector<16x8xf32>
    %26 = vector.shape_cast %23 : vector<16x8xf32> to vector<1x16x8xf32>
    tpu.vector_store %arg5[%c0_23, %c0_24, %c32], %26 {strides = array<i32>} : memref<2x16x128xf32, #tpu.memory_space<vmem>>, vector<1x16x8xf32>,
    %c0_25 = arith.constant 0 : index
    %c0_26 = arith.constant 0 : index
    %c79 = arith.constant 79 : index
    %27 = vector.load %arg1[%c0_25, %c0_26, %c79] : memref<2x16x209xf32, #tpu.memory_space<vmem>>, vector<1x16x8xf32>
    %28 = vector.shape_cast %27 : vector<1x16x8xf32> to vector<16x8xf32>
    %c0_27 = arith.constant 0 : index
    %c0_28 = arith.constant 0 : index
    %c40 = arith.constant 40 : index
    %29 = vector.load %arg5[%c0_27, %c0_28, %c40] : memref<2x16x128xf32, #tpu.memory_space<vmem>>, vector<1x16x8xf32>
    %30 = vector.shape_cast %29 : vector<1x16x8xf32> to vector<16x8xf32>
    %31 = vector.shape_cast %28 : vector<16x8xf32> to vector<1x16x8xf32>
    tpu.vector_store %arg5[%c0_27, %c0_28, %c40], %31 {strides = array<i32>} : memref<2x16x128xf32, #tpu.memory_space<vmem>>, vector<1x16x8xf32>,
    %c0_29 = arith.constant 0 : index
    %c0_30 = arith.constant 0 : index
    %c90 = arith.constant 90 : index
    %32 = vector.load %arg1[%c0_29, %c0_30, %c90] : memref<2x16x209xf32, #tpu.memory_space<vmem>>, vector<1x16x8xf32>
    %33 = vector.shape_cast %32 : vector<1x16x8xf32> to vector<16x8xf32>
    %c0_31 = arith.constant 0 : index
    %c0_32 = arith.constant 0 : index
    %c48 = arith.constant 48 : index
    %34 = vector.load %arg5[%c0_31, %c0_32, %c48] : memref<2x16x128xf32, #tpu.memory_space<vmem>>, vector<1x16x8xf32>
    %35 = vector.shape_cast %34 : vector<1x16x8xf32> to vector<16x8xf32>
    %36 = vector.shape_cast %33 : vector<16x8xf32> to vector<1x16x8xf32>
    tpu.vector_store %arg5[%c0_31, %c0_32, %c48], %36 {strides = array<i32>} : memref<2x16x128xf32, #tpu.memory_space<vmem>>, vector<1x16x8xf32>,
    %c0_33 = arith.constant 0 : index
    %c0_34 = arith.constant 0 : index
    %c101 = arith.constant 101 : index
    %37 = vector.load %arg1[%c0_33, %c0_34, %c101] : memref<2x16x209xf32, #tpu.memory_space<vmem>>, vector<1x16x8xf32>
    %38 = vector.shape_cast %37 : vector<1x16x8xf32> to vector<16x8xf32>
    %c0_35 = arith.constant 0 : index
    %c0_36 = arith.constant 0 : index
    %c56 = arith.constant 56 : index
    %39 = vector.load %arg5[%c0_35, %c0_36, %c56] : memref<2x16x128xf32, #tpu.memory_space<vmem>>, vector<1x16x8xf32>
    %40 = vector.shape_cast %39 : vector<1x16x8xf32> to vector<16x8xf32>
    %41 = vector.shape_cast %38 : vector<16x8xf32> to vector<1x16x8xf32>
    tpu.vector_store %arg5[%c0_35, %c0_36, %c56], %41 {strides = array<i32>} : memref<2x16x128xf32, #tpu.memory_space<vmem>>, vector<1x16x8xf32>,
    %c0_37 = arith.constant 0 : index
    %c0_38 = arith.constant 0 : index
    %c112 = arith.constant 112 : index
    %42 = vector.load %arg1[%c0_37, %c0_38, %c112] : memref<2x16x209xf32, #tpu.memory_space<vmem>>, vector<1x16x8xf32>
    %43 = vector.shape_cast %42 : vector<1x16x8xf32> to vector<16x8xf32>
    %c0_39 = arith.constant 0 : index
    %c0_40 = arith.constant 0 : index
    %c64 = arith.constant 64 : index
    %44 = vector.load %arg5[%c0_39, %c0_40, %c64] : memref<2x16x128xf32, #tpu.memory_space<vmem>>, vector<1x16x8xf32>
    %45 = vector.shape_cast %44 : vector<1x16x8xf32> to vector<16x8xf32>
    %46 = vector.shape_cast %43 : vector<16x8xf32> to vector<1x16x8xf32>
    tpu.vector_store %arg5[%c0_39, %c0_40, %c64], %46 {strides = array<i32>} : memref<2x16x128xf32, #tpu.memory_space<vmem>>, vector<1x16x8xf32>,
    %c0_41 = arith.constant 0 : index
    %c0_42 = arith.constant 0 : index
    %c123 = arith.constant 123 : index
    %47 = vector.load %arg1[%c0_41, %c0_42, %c123] : memref<2x16x209xf32, #tpu.memory_space<vmem>>, vector<1x16x8xf32>
    %48 = vector.shape_cast %47 : vector<1x16x8xf32> to vector<16x8xf32>
    %c0_43 = arith.constant 0 : index
    %c0_44 = arith.constant 0 : index
    %c72 = arith.constant 72 : index
    %49 = vector.load %arg5[%c0_43, %c0_44, %c72] : memref<2x16x128xf32, #tpu.memory_space<vmem>>, vector<1x16x8xf32>
    %50 = vector.shape_cast %49 : vector<1x16x8xf32> to vector<16x8xf32>
    %51 = vector.shape_cast %48 : vector<16x8xf32> to vector<1x16x8xf32>
    tpu.vector_store %arg5[%c0_43, %c0_44, %c72], %51 {strides = array<i32>} : memref<2x16x128xf32, #tpu.memory_space<vmem>>, vector<1x16x8xf32>,
    %c0_45 = arith.constant 0 : index
    %c0_46 = arith.constant 0 : index
    %c134 = arith.constant 134 : index
    %52 = vector.load %arg1[%c0_45, %c0_46, %c134] : memref<2x16x209xf32, #tpu.memory_space<vmem>>, vector<1x16x8xf32>
    %53 = vector.shape_cast %52 : vector<1x16x8xf32> to vector<16x8xf32>
    %c0_47 = arith.constant 0 : index
    %c0_48 = arith.constant 0 : index
    %c80 = arith.constant 80 : index
    %54 = vector.load %arg5[%c0_47, %c0_48, %c80] : memref<2x16x128xf32, #tpu.memory_space<vmem>>, vector<1x16x8xf32>
    %55 = vector.shape_cast %54 : vector<1x16x8xf32> to vector<16x8xf32>
    %56 = vector.shape_cast %53 : vector<16x8xf32> to vector<1x16x8xf32>
    tpu.vector_store %arg5[%c0_47, %c0_48, %c80], %56 {strides = array<i32>} : memref<2x16x128xf32, #tpu.memory_space<vmem>>, vector<1x16x8xf32>,
    %c0_49 = arith.constant 0 : index
    %c0_50 = arith.constant 0 : index
    %c145 = arith.constant 145 : index
    %57 = vector.load %arg1[%c0_49, %c0_50, %c145] : memref<2x16x209xf32, #tpu.memory_space<vmem>>, vector<1x16x8xf32>
    %58 = vector.shape_cast %57 : vector<1x16x8xf32> to vector<16x8xf32>
    %c0_51 = arith.constant 0 : index
    %c0_52 = arith.constant 0 : index
    %c88 = arith.constant 88 : index
    %59 = vector.load %arg5[%c0_51, %c0_52, %c88] : memref<2x16x128xf32, #tpu.memory_space<vmem>>, vector<1x16x8xf32>
    %60 = vector.shape_cast %59 : vector<1x16x8xf32> to vector<16x8xf32>
    %61 = vector.shape_cast %58 : vector<16x8xf32> to vector<1x16x8xf32>
    tpu.vector_store %arg5[%c0_51, %c0_52, %c88], %61 {strides = array<i32>} : memref<2x16x128xf32, #tpu.memory_space<vmem>>, vector<1x16x8xf32>,
    %c0_53 = arith.constant 0 : index
    %c0_54 = arith.constant 0 : index
    %c156 = arith.constant 156 : index
    %62 = vector.load %arg1[%c0_53, %c0_54, %c156] : memref<2x16x209xf32, #tpu.memory_space<vmem>>, vector<1x16x8xf32>
    %63 = vector.shape_cast %62 : vector<1x16x8xf32> to vector<16x8xf32>
    %c0_55 = arith.constant 0 : index
    %c0_56 = arith.constant 0 : index
    %c96 = arith.constant 96 : index
    %64 = vector.load %arg5[%c0_55, %c0_56, %c96] : memref<2x16x128xf32, #tpu.memory_space<vmem>>, vector<1x16x8xf32>
    %65 = vector.shape_cast %64 : vector<1x16x8xf32> to vector<16x8xf32>
    %66 = vector.shape_cast %63 : vector<16x8xf32> to vector<1x16x8xf32>
    tpu.vector_store %arg5[%c0_55, %c0_56, %c96], %66 {strides = array<i32>} : memref<2x16x128xf32, #tpu.memory_space<vmem>>, vector<1x16x8xf32>,
    %c0_57 = arith.constant 0 : index
    %c0_58 = arith.constant 0 : index
    %c167 = arith.constant 167 : index
    %67 = vector.load %arg1[%c0_57, %c0_58, %c167] : memref<2x16x209xf32, #tpu.memory_space<vmem>>, vector<1x16x8xf32>
    %68 = vector.shape_cast %67 : vector<1x16x8xf32> to vector<16x8xf32>
    %c0_59 = arith.constant 0 : index
    %c0_60 = arith.constant 0 : index
    %c104 = arith.constant 104 : index
    %69 = vector.load %arg5[%c0_59, %c0_60, %c104] : memref<2x16x128xf32, #tpu.memory_space<vmem>>, vector<1x16x8xf32>
    %70 = vector.shape_cast %69 : vector<1x16x8xf32> to vector<16x8xf32>
    %71 = vector.shape_cast %68 : vector<16x8xf32> to vector<1x16x8xf32>
    tpu.vector_store %arg5[%c0_59, %c0_60, %c104], %71 {strides = array<i32>} : memref<2x16x128xf32, #tpu.memory_space<vmem>>, vector<1x16x8xf32>,
    %c0_61 = arith.constant 0 : index
    %c0_62 = arith.constant 0 : index
    %c178 = arith.constant 178 : index
    %72 = vector.load %arg1[%c0_61, %c0_62, %c178] : memref<2x16x209xf32, #tpu.memory_space<vmem>>, vector<1x16x8xf32>
    %73 = vector.shape_cast %72 : vector<1x16x8xf32> to vector<16x8xf32>
    %c0_63 = arith.constant 0 : index
    %c0_64 = arith.constant 0 : index
    %c112_65 = arith.constant 112 : index
    %74 = vector.load %arg5[%c0_63, %c0_64, %c112_65] : memref<2x16x128xf32, #tpu.memory_space<vmem>>, vector<1x16x8xf32>
    %75 = vector.shape_cast %74 : vector<1x16x8xf32> to vector<16x8xf32>
    %76 = vector.shape_cast %73 : vector<16x8xf32> to vector<1x16x8xf32>
    tpu.vector_store %arg5[%c0_63, %c0_64, %c112_65], %76 {strides = array<i32>} : memref<2x16x128xf32, #tpu.memory_space<vmem>>, vector<1x16x8xf32>,
    %c0_66 = arith.constant 0 : index
    %c0_67 = arith.constant 0 : index
    %c189 = arith.constant 189 : index
    %77 = vector.load %arg1[%c0_66, %c0_67, %c189] : memref<2x16x209xf32, #tpu.memory_space<vmem>>, vector<1x16x8xf32>
    %78 = vector.shape_cast %77 : vector<1x16x8xf32> to vector<16x8xf32>
    %c0_68 = arith.constant 0 : index
    %c0_69 = arith.constant 0 : index
    %c120 = arith.constant 120 : index
    %79 = vector.load %arg5[%c0_68, %c0_69, %c120] : memref<2x16x128xf32, #tpu.memory_space<vmem>>, vector<1x16x8xf32>
    %80 = vector.shape_cast %79 : vector<1x16x8xf32> to vector<16x8xf32>
    %81 = vector.shape_cast %78 : vector<16x8xf32> to vector<1x16x8xf32>
    tpu.vector_store %arg5[%c0_68, %c0_69, %c120], %81 {strides = array<i32>} : memref<2x16x128xf32, #tpu.memory_space<vmem>>, vector<1x16x8xf32>,
    %c0_70 = arith.constant 0 : index
    %c0_71 = arith.constant 0 : index
    %c0_72 = arith.constant 0 : index
    %82 = vector.load %arg5[%c0_70, %c0_71, %c0_72] : memref<2x16x128xf32, #tpu.memory_space<vmem>>, vector<1x16x128xf32>
    %83 = vector.shape_cast %82 : vector<1x16x128xf32> to vector<16x128xf32>
    %cst = arith.constant dense<0.000000e+00> : vector<68x128xf32>
    %84 = tpu.matmul %0, %83, %cst {dimension_numbers = #tpu.dot_dimension_numbers<[1], [0], [0], [1], [0, 0, 1, 1], [], []>} : vector<68x16xf32>, vector<16x128xf32>, vector<68x128xf32> -> vector<68x128xf32>
    %85 = vector.broadcast %1 : vector<68x1xf32> to vector<68x128xf32>
    %86 = arith.addf %84, %85 : vector<68x128xf32>
    %cst_73 = arith.constant -3.757000e-01 : f32
    %87 = vector.broadcast %cst_73 : f32 to vector<68x128xf32>
    %88 = arith.mulf %87, %86 : vector<68x128xf32>
    %89 = arith.maximumf %86, %88 : vector<68x128xf32>
    %c0_74 = arith.constant 0 : index
    %c0_75 = arith.constant 0 : index
    %c0_76 = arith.constant 0 : index
    %90 = vector.load %arg4[%c0_74, %c0_75, %c0_76] : memref<2x68x128xf32, #tpu.memory_space<vmem>>, vector<1x68x128xf32>
    %91 = vector.shape_cast %90 : vector<1x68x128xf32> to vector<68x128xf32>
    %92 = vector.shape_cast %89 : vector<68x128xf32> to vector<1x68x128xf32>
    tpu.vector_store %arg4[%c0_74, %c0_75, %c0_76], %92 {strides = array<i32>} : memref<2x68x128xf32, #tpu.memory_space<vmem>>, vector<1x68x128xf32>,
    %c1 = arith.constant 1 : index
    %c0_77 = arith.constant 0 : index
    %c24_78 = arith.constant 24 : index
    %93 = vector.load %arg1[%c1, %c0_77, %c24_78] : memref<2x16x209xf32, #tpu.memory_space<vmem>>, vector<1x16x8xf32>
    %94 = vector.shape_cast %93 : vector<1x16x8xf32> to vector<16x8xf32>
    %c1_79 = arith.constant 1 : index
    %c0_80 = arith.constant 0 : index
    %c0_81 = arith.constant 0 : index
    %95 = vector.load %arg5[%c1_79, %c0_80, %c0_81] : memref<2x16x128xf32, #tpu.memory_space<vmem>>, vector<1x16x8xf32>
    %96 = vector.shape_cast %95 : vector<1x16x8xf32> to vector<16x8xf32>
    %97 = vector.shape_cast %94 : vector<16x8xf32> to vector<1x16x8xf32>
    tpu.vector_store %arg5[%c1_79, %c0_80, %c0_81], %97 {strides = array<i32>} : memref<2x16x128xf32, #tpu.memory_space<vmem>>, vector<1x16x8xf32>,
    %c1_82 = arith.constant 1 : index
    %c0_83 = arith.constant 0 : index
    %c35_84 = arith.constant 35 : index
    %98 = vector.load %arg1[%c1_82, %c0_83, %c35_84] : memref<2x16x209xf32, #tpu.memory_space<vmem>>, vector<1x16x8xf32>
    %99 = vector.shape_cast %98 : vector<1x16x8xf32> to vector<16x8xf32>
    %c1_85 = arith.constant 1 : index
    %c0_86 = arith.constant 0 : index
    %c8_87 = arith.constant 8 : index
    %100 = vector.load %arg5[%c1_85, %c0_86, %c8_87] : memref<2x16x128xf32, #tpu.memory_space<vmem>>, vector<1x16x8xf32>
    %101 = vector.shape_cast %100 : vector<1x16x8xf32> to vector<16x8xf32>
    %102 = vector.shape_cast %99 : vector<16x8xf32> to vector<1x16x8xf32>
    tpu.vector_store %arg5[%c1_85, %c0_86, %c8_87], %102 {strides = array<i32>} : memref<2x16x128xf32, #tpu.memory_space<vmem>>, vector<1x16x8xf32>,
    %c1_88 = arith.constant 1 : index
    %c0_89 = arith.constant 0 : index
    %c46_90 = arith.constant 46 : index
    %103 = vector.load %arg1[%c1_88, %c0_89, %c46_90] : memref<2x16x209xf32, #tpu.memory_space<vmem>>, vector<1x16x8xf32>
    %104 = vector.shape_cast %103 : vector<1x16x8xf32> to vector<16x8xf32>
    %c1_91 = arith.constant 1 : index
    %c0_92 = arith.constant 0 : index
    %c16_93 = arith.constant 16 : index
    %105 = vector.load %arg5[%c1_91, %c0_92, %c16_93] : memref<2x16x128xf32, #tpu.memory_space<vmem>>, vector<1x16x8xf32>
    %106 = vector.shape_cast %105 : vector<1x16x8xf32> to vector<16x8xf32>
    %107 = vector.shape_cast %104 : vector<16x8xf32> to vector<1x16x8xf32>
    tpu.vector_store %arg5[%c1_91, %c0_92, %c16_93], %107 {strides = array<i32>} : memref<2x16x128xf32, #tpu.memory_space<vmem>>, vector<1x16x8xf32>,
    %c1_94 = arith.constant 1 : index
    %c0_95 = arith.constant 0 : index
    %c57_96 = arith.constant 57 : index
    %108 = vector.load %arg1[%c1_94, %c0_95, %c57_96] : memref<2x16x209xf32, #tpu.memory_space<vmem>>, vector<1x16x8xf32>
    %109 = vector.shape_cast %108 : vector<1x16x8xf32> to vector<16x8xf32>
    %c1_97 = arith.constant 1 : index
    %c0_98 = arith.constant 0 : index
    %c24_99 = arith.constant 24 : index
    %110 = vector.load %arg5[%c1_97, %c0_98, %c24_99] : memref<2x16x128xf32, #tpu.memory_space<vmem>>, vector<1x16x8xf32>
    %111 = vector.shape_cast %110 : vector<1x16x8xf32> to vector<16x8xf32>
    %112 = vector.shape_cast %109 : vector<16x8xf32> to vector<1x16x8xf32>
    tpu.vector_store %arg5[%c1_97, %c0_98, %c24_99], %112 {strides = array<i32>} : memref<2x16x128xf32, #tpu.memory_space<vmem>>, vector<1x16x8xf32>,
    %c1_100 = arith.constant 1 : index
    %c0_101 = arith.constant 0 : index
    %c68_102 = arith.constant 68 : index
    %113 = vector.load %arg1[%c1_100, %c0_101, %c68_102] : memref<2x16x209xf32, #tpu.memory_space<vmem>>, vector<1x16x8xf32>
    %114 = vector.shape_cast %113 : vector<1x16x8xf32> to vector<16x8xf32>
    %c1_103 = arith.constant 1 : index
    %c0_104 = arith.constant 0 : index
    %c32_105 = arith.constant 32 : index
    %115 = vector.load %arg5[%c1_103, %c0_104, %c32_105] : memref<2x16x128xf32, #tpu.memory_space<vmem>>, vector<1x16x8xf32>
    %116 = vector.shape_cast %115 : vector<1x16x8xf32> to vector<16x8xf32>
    %117 = vector.shape_cast %114 : vector<16x8xf32> to vector<1x16x8xf32>
    tpu.vector_store %arg5[%c1_103, %c0_104, %c32_105], %117 {strides = array<i32>} : memref<2x16x128xf32, #tpu.memory_space<vmem>>, vector<1x16x8xf32>,
    %c1_106 = arith.constant 1 : index
    %c0_107 = arith.constant 0 : index
    %c79_108 = arith.constant 79 : index
    %118 = vector.load %arg1[%c1_106, %c0_107, %c79_108] : memref<2x16x209xf32, #tpu.memory_space<vmem>>, vector<1x16x8xf32>
    %119 = vector.shape_cast %118 : vector<1x16x8xf32> to vector<16x8xf32>
    %c1_109 = arith.constant 1 : index
    %c0_110 = arith.constant 0 : index
    %c40_111 = arith.constant 40 : index
    %120 = vector.load %arg5[%c1_109, %c0_110, %c40_111] : memref<2x16x128xf32, #tpu.memory_space<vmem>>, vector<1x16x8xf32>
    %121 = vector.shape_cast %120 : vector<1x16x8xf32> to vector<16x8xf32>
    %122 = vector.shape_cast %119 : vector<16x8xf32> to vector<1x16x8xf32>
    tpu.vector_store %arg5[%c1_109, %c0_110, %c40_111], %122 {strides = array<i32>} : memref<2x16x128xf32, #tpu.memory_space<vmem>>, vector<1x16x8xf32>,
    %c1_112 = arith.constant 1 : index
    %c0_113 = arith.constant 0 : index
    %c90_114 = arith.constant 90 : index
    %123 = vector.load %arg1[%c1_112, %c0_113, %c90_114] : memref<2x16x209xf32, #tpu.memory_space<vmem>>, vector<1x16x8xf32>
    %124 = vector.shape_cast %123 : vector<1x16x8xf32> to vector<16x8xf32>
    %c1_115 = arith.constant 1 : index
    %c0_116 = arith.constant 0 : index
    %c48_117 = arith.constant 48 : index
    %125 = vector.load %arg5[%c1_115, %c0_116, %c48_117] : memref<2x16x128xf32, #tpu.memory_space<vmem>>, vector<1x16x8xf32>
    %126 = vector.shape_cast %125 : vector<1x16x8xf32> to vector<16x8xf32>
    %127 = vector.shape_cast %124 : vector<16x8xf32> to vector<1x16x8xf32>
    tpu.vector_store %arg5[%c1_115, %c0_116, %c48_117], %127 {strides = array<i32>} : memref<2x16x128xf32, #tpu.memory_space<vmem>>, vector<1x16x8xf32>,
    %c1_118 = arith.constant 1 : index
    %c0_119 = arith.constant 0 : index
    %c101_120 = arith.constant 101 : index
    %128 = vector.load %arg1[%c1_118, %c0_119, %c101_120] : memref<2x16x209xf32, #tpu.memory_space<vmem>>, vector<1x16x8xf32>
    %129 = vector.shape_cast %128 : vector<1x16x8xf32> to vector<16x8xf32>
    %c1_121 = arith.constant 1 : index
    %c0_122 = arith.constant 0 : index
    %c56_123 = arith.constant 56 : index
    %130 = vector.load %arg5[%c1_121, %c0_122, %c56_123] : memref<2x16x128xf32, #tpu.memory_space<vmem>>, vector<1x16x8xf32>
    %131 = vector.shape_cast %130 : vector<1x16x8xf32> to vector<16x8xf32>
    %132 = vector.shape_cast %129 : vector<16x8xf32> to vector<1x16x8xf32>
    tpu.vector_store %arg5[%c1_121, %c0_122, %c56_123], %132 {strides = array<i32>} : memref<2x16x128xf32, #tpu.memory_space<vmem>>, vector<1x16x8xf32>,
    %c1_124 = arith.constant 1 : index
    %c0_125 = arith.constant 0 : index
    %c112_126 = arith.constant 112 : index
    %133 = vector.load %arg1[%c1_124, %c0_125, %c112_126] : memref<2x16x209xf32, #tpu.memory_space<vmem>>, vector<1x16x8xf32>
    %134 = vector.shape_cast %133 : vector<1x16x8xf32> to vector<16x8xf32>
    %c1_127 = arith.constant 1 : index
    %c0_128 = arith.constant 0 : index
    %c64_129 = arith.constant 64 : index
    %135 = vector.load %arg5[%c1_127, %c0_128, %c64_129] : memref<2x16x128xf32, #tpu.memory_space<vmem>>, vector<1x16x8xf32>
    %136 = vector.shape_cast %135 : vector<1x16x8xf32> to vector<16x8xf32>
    %137 = vector.shape_cast %134 : vector<16x8xf32> to vector<1x16x8xf32>
    tpu.vector_store %arg5[%c1_127, %c0_128, %c64_129], %137 {strides = array<i32>} : memref<2x16x128xf32, #tpu.memory_space<vmem>>, vector<1x16x8xf32>,
    %c1_130 = arith.constant 1 : index
    %c0_131 = arith.constant 0 : index
    %c123_132 = arith.constant 123 : index
    %138 = vector.load %arg1[%c1_130, %c0_131, %c123_132] : memref<2x16x209xf32, #tpu.memory_space<vmem>>, vector<1x16x8xf32>
    %139 = vector.shape_cast %138 : vector<1x16x8xf32> to vector<16x8xf32>
    %c1_133 = arith.constant 1 : index
    %c0_134 = arith.constant 0 : index
    %c72_135 = arith.constant 72 : index
    %140 = vector.load %arg5[%c1_133, %c0_134, %c72_135] : memref<2x16x128xf32, #tpu.memory_space<vmem>>, vector<1x16x8xf32>
    %141 = vector.shape_cast %140 : vector<1x16x8xf32> to vector<16x8xf32>
    %142 = vector.shape_cast %139 : vector<16x8xf32> to vector<1x16x8xf32>
    tpu.vector_store %arg5[%c1_133, %c0_134, %c72_135], %142 {strides = array<i32>} : memref<2x16x128xf32, #tpu.memory_space<vmem>>, vector<1x16x8xf32>,
    %c1_136 = arith.constant 1 : index
    %c0_137 = arith.constant 0 : index
    %c134_138 = arith.constant 134 : index
    %143 = vector.load %arg1[%c1_136, %c0_137, %c134_138] : memref<2x16x209xf32, #tpu.memory_space<vmem>>, vector<1x16x8xf32>
    %144 = vector.shape_cast %143 : vector<1x16x8xf32> to vector<16x8xf32>
    %c1_139 = arith.constant 1 : index
    %c0_140 = arith.constant 0 : index
    %c80_141 = arith.constant 80 : index
    %145 = vector.load %arg5[%c1_139, %c0_140, %c80_141] : memref<2x16x128xf32, #tpu.memory_space<vmem>>, vector<1x16x8xf32>
    %146 = vector.shape_cast %145 : vector<1x16x8xf32> to vector<16x8xf32>
    %147 = vector.shape_cast %144 : vector<16x8xf32> to vector<1x16x8xf32>
    tpu.vector_store %arg5[%c1_139, %c0_140, %c80_141], %147 {strides = array<i32>} : memref<2x16x128xf32, #tpu.memory_space<vmem>>, vector<1x16x8xf32>,
    %c1_142 = arith.constant 1 : index
    %c0_143 = arith.constant 0 : index
    %c145_144 = arith.constant 145 : index
    %148 = vector.load %arg1[%c1_142, %c0_143, %c145_144] : memref<2x16x209xf32, #tpu.memory_space<vmem>>, vector<1x16x8xf32>
    %149 = vector.shape_cast %148 : vector<1x16x8xf32> to vector<16x8xf32>
    %c1_145 = arith.constant 1 : index
    %c0_146 = arith.constant 0 : index
    %c88_147 = arith.constant 88 : index
    %150 = vector.load %arg5[%c1_145, %c0_146, %c88_147] : memref<2x16x128xf32, #tpu.memory_space<vmem>>, vector<1x16x8xf32>
    %151 = vector.shape_cast %150 : vector<1x16x8xf32> to vector<16x8xf32>
    %152 = vector.shape_cast %149 : vector<16x8xf32> to vector<1x16x8xf32>
    tpu.vector_store %arg5[%c1_145, %c0_146, %c88_147], %152 {strides = array<i32>} : memref<2x16x128xf32, #tpu.memory_space<vmem>>, vector<1x16x8xf32>,
    %c1_148 = arith.constant 1 : index
    %c0_149 = arith.constant 0 : index
    %c156_150 = arith.constant 156 : index
    %153 = vector.load %arg1[%c1_148, %c0_149, %c156_150] : memref<2x16x209xf32, #tpu.memory_space<vmem>>, vector<1x16x8xf32>
    %154 = vector.shape_cast %153 : vector<1x16x8xf32> to vector<16x8xf32>
    %c1_151 = arith.constant 1 : index
    %c0_152 = arith.constant 0 : index
    %c96_153 = arith.constant 96 : index
    %155 = vector.load %arg5[%c1_151, %c0_152, %c96_153] : memref<2x16x128xf32, #tpu.memory_space<vmem>>, vector<1x16x8xf32>
    %156 = vector.shape_cast %155 : vector<1x16x8xf32> to vector<16x8xf32>
    %157 = vector.shape_cast %154 : vector<16x8xf32> to vector<1x16x8xf32>
    tpu.vector_store %arg5[%c1_151, %c0_152, %c96_153], %157 {strides = array<i32>} : memref<2x16x128xf32, #tpu.memory_space<vmem>>, vector<1x16x8xf32>,
    %c1_154 = arith.constant 1 : index
    %c0_155 = arith.constant 0 : index
    %c167_156 = arith.constant 167 : index
    %158 = vector.load %arg1[%c1_154, %c0_155, %c167_156] : memref<2x16x209xf32, #tpu.memory_space<vmem>>, vector<1x16x8xf32>
    %159 = vector.shape_cast %158 : vector<1x16x8xf32> to vector<16x8xf32>
    %c1_157 = arith.constant 1 : index
    %c0_158 = arith.constant 0 : index
    %c104_159 = arith.constant 104 : index
    %160 = vector.load %arg5[%c1_157, %c0_158, %c104_159] : memref<2x16x128xf32, #tpu.memory_space<vmem>>, vector<1x16x8xf32>
    %161 = vector.shape_cast %160 : vector<1x16x8xf32> to vector<16x8xf32>
    %162 = vector.shape_cast %159 : vector<16x8xf32> to vector<1x16x8xf32>
    tpu.vector_store %arg5[%c1_157, %c0_158, %c104_159], %162 {strides = array<i32>} : memref<2x16x128xf32, #tpu.memory_space<vmem>>, vector<1x16x8xf32>,
    %c1_160 = arith.constant 1 : index
    %c0_161 = arith.constant 0 : index
    %c178_162 = arith.constant 178 : index
    %163 = vector.load %arg1[%c1_160, %c0_161, %c178_162] : memref<2x16x209xf32, #tpu.memory_space<vmem>>, vector<1x16x8xf32>
    %164 = vector.shape_cast %163 : vector<1x16x8xf32> to vector<16x8xf32>
    %c1_163 = arith.constant 1 : index
    %c0_164 = arith.constant 0 : index
    %c112_165 = arith.constant 112 : index
    %165 = vector.load %arg5[%c1_163, %c0_164, %c112_165] : memref<2x16x128xf32, #tpu.memory_space<vmem>>, vector<1x16x8xf32>
    %166 = vector.shape_cast %165 : vector<1x16x8xf32> to vector<16x8xf32>
    %167 = vector.shape_cast %164 : vector<16x8xf32> to vector<1x16x8xf32>
    tpu.vector_store %arg5[%c1_163, %c0_164, %c112_165], %167 {strides = array<i32>} : memref<2x16x128xf32, #tpu.memory_space<vmem>>, vector<1x16x8xf32>,
    %c1_166 = arith.constant 1 : index
    %c0_167 = arith.constant 0 : index
    %c189_168 = arith.constant 189 : index
    %168 = vector.load %arg1[%c1_166, %c0_167, %c189_168] : memref<2x16x209xf32, #tpu.memory_space<vmem>>, vector<1x16x8xf32>
    %169 = vector.shape_cast %168 : vector<1x16x8xf32> to vector<16x8xf32>
    %c1_169 = arith.constant 1 : index
    %c0_170 = arith.constant 0 : index
    %c120_171 = arith.constant 120 : index
    %170 = vector.load %arg5[%c1_169, %c0_170, %c120_171] : memref<2x16x128xf32, #tpu.memory_space<vmem>>, vector<1x16x8xf32>
    %171 = vector.shape_cast %170 : vector<1x16x8xf32> to vector<16x8xf32>
    %172 = vector.shape_cast %169 : vector<16x8xf32> to vector<1x16x8xf32>
    tpu.vector_store %arg5[%c1_169, %c0_170, %c120_171], %172 {strides = array<i32>} : memref<2x16x128xf32, #tpu.memory_space<vmem>>, vector<1x16x8xf32>,
    %c1_172 = arith.constant 1 : index
    %c0_173 = arith.constant 0 : index
    %c0_174 = arith.constant 0 : index
    %173 = vector.load %arg5[%c1_172, %c0_173, %c0_174] : memref<2x16x128xf32, #tpu.memory_space<vmem>>, vector<1x16x128xf32>
    %174 = vector.shape_cast %173 : vector<1x16x128xf32> to vector<16x128xf32>
    %cst_175 = arith.constant dense<0.000000e+00> : vector<68x128xf32>
    %175 = tpu.matmul %0, %174, %cst_175 {dimension_numbers = #tpu.dot_dimension_numbers<[1], [0], [0], [1], [0, 0, 1, 1], [], []>} : vector<68x16xf32>, vector<16x128xf32>, vector<68x128xf32> -> vector<68x128xf32>
    %176 = vector.broadcast %1 : vector<68x1xf32> to vector<68x128xf32>
    %177 = arith.addf %175, %176 : vector<68x128xf32>
    %cst_176 = arith.constant -3.757000e-01 : f32
    %178 = vector.broadcast %cst_176 : f32 to vector<68x128xf32>
    %179 = arith.mulf %178, %177 : vector<68x128xf32>
    %180 = arith.maximumf %177, %179 : vector<68x128xf32>
    %c1_177 = arith.constant 1 : index
    %c0_178 = arith.constant 0 : index
    %c0_179 = arith.constant 0 : index
    %181 = vector.load %arg4[%c1_177, %c0_178, %c0_179] : memref<2x68x128xf32, #tpu.memory_space<vmem>>, vector<1x68x128xf32>
    %182 = vector.shape_cast %181 : vector<1x68x128xf32> to vector<68x128xf32>
    %183 = vector.shape_cast %180 : vector<68x128xf32> to vector<1x68x128xf32>
    tpu.vector_store %arg4[%c1_177, %c0_178, %c0_179], %183 {strides = array<i32>} : memref<2x68x128xf32, #tpu.memory_space<vmem>>, vector<1x68x128xf32>,
    return
  }
  func.func @transform_0(%arg0: i32) -> (i32, i32, i32) {
    %c0_i32 = arith.constant 0 : i32
    %c0_i32_0 = arith.constant 0 : i32
    %c0_i32_1 = arith.constant 0 : i32
    return %arg0, %c0_i32, %c0_i32_0 : i32, i32, i32
  }
  func.func @transform_1(%arg0: i32) -> (i32, i32) {
    %c0_i32 = arith.constant 0 : i32
    %c0_i32_0 = arith.constant 0 : i32
    %c0_i32_1 = arith.constant 0 : i32
    return %c0_i32, %c0_i32_0 : i32, i32
  }
  func.func @transform_2(%arg0: i32) -> (i32, i32) {
    %c0_i32 = arith.constant 0 : i32
    %c0_i32_0 = arith.constant 0 : i32
    %c0_i32_1 = arith.constant 0 : i32
    return %c0_i32, %c0_i32_0 : i32, i32
  }
  func.func @transform_3(%arg0: i32) -> (i32, i32, i32) {
    %c0_i32 = arith.constant 0 : i32
    %c0_i32_0 = arith.constant 0 : i32
    %c0_i32_1 = arith.constant 0 : i32
    return %arg0, %c0_i32, %c0_i32_0 : i32, i32, i32
  }
}

</mosaic_0001>

<llo_original>
// kernel: model_forward.1
$region0: #{model_forward.1}
  #allocation0 [shape = 'u32[]', space=smem, size = 0x4, offset = 0x4, fixed_abs, tag = 'smem constant byte address 0x4 - core index']
  #allocation1 [shape = 'u32[72,128]{1,0:T(1,128)}', space=vmem, size = 0x9000, scoped, tag = 'internal scratch']
  #allocation2 [shape = 'f32[2,16,128]{2,1,0:T(8,128)}', space=vmem, size = 0x4000, scoped, tag = 'scratch operand']
  %s0 = inlined_call_operand.vmem [shape: f32[2,16,209], index: 0, kind: input, shape index: {}]
  %s1 = inlined_call_operand.vmem [shape: f32[68,16], index: 1, kind: input, shape index: {}]
  %s2 = inlined_call_operand.vmem [shape: f32[68,1], index: 2, kind: input, shape index: {}]
  %s3 = inlined_call_operand.vmem [shape: f32[2,68,128], index: 3, kind: output, shape index: {}]
  %s4 = sld [smem:[#allocation0]]
  $region22: #{model_forward.1} parent=0
    _
  %s6 = ssub.s32 1, %s4
  %s7 = scalar_select 0, %s6, %s4
  // Predicated region
  $region2: #{model_forward.1} parent=0 // pred_check
    _
  $region3: #{model_forward.1} parent=0 // pred_check_branch
    %9 = sbr.rel (0) target = $region5
  $region4: #{model_forward.1} parent=0 // pred_region
    _
  $region5: #{model_forward.1} parent=0 // pred_fallthru
    _
  // Predicated region
  $region6: #{model_forward.1} parent=0 // pred_check
    _
  $region7: #{model_forward.1} parent=0 // pred_check_branch
    %11 = sbr.rel (0) target = $region9
  $region8: #{model_forward.1} parent=0 // pred_region
    _
  $region9: #{model_forward.1} parent=0 // pred_fallthru
    _
  // Predicated region
  $region10: #{model_forward.1} parent=0 // pred_check
    _
  $region11: #{model_forward.1} parent=0 // pred_check_branch
    %13 = sbr.rel (0) target = $region13
  $region12: #{model_forward.1} parent=0 // pred_region
    _
  $region13: #{model_forward.1} parent=0 // pred_fallthru
    _
  %v14 = vld [vmem:[%s1] sm:$0xff]
  %v15 = vld [vmem:[%s1 + $0x8] sm:$0xff]
  %v16 = vld [vmem:[%s1 + $0x10] sm:$0xff]
  %v17 = vld [vmem:[%s1 + $0x18] sm:$0xff]
  %v18 = vld [vmem:[%s1 + $0x20] sm:$0xff]
  %v19 = vld [vmem:[%s1 + $0x28] sm:$0xff]
  %v20 = vld [vmem:[%s1 + $0x30] sm:$0xff]
  %v21 = vld [vmem:[%s1 + $0x38] sm:$0xff]
  %v22 = vld [vmem:[%s1 + $0x40] sm:$0xf]
  %v23 = vld [vmem:[%s2] sm:$0xff]
  %v24 = vld [vmem:[%s2 + $0x8] sm:$0xff]
  %v25 = vld [vmem:[%s2 + $0x10] sm:$0xff]
  %v26 = vld [vmem:[%s2 + $0x18] sm:$0xff]
  %v27 = vld [vmem:[%s2 + $0x20] sm:$0xff]
  %v28 = vld [vmem:[%s2 + $0x28] sm:$0xff]
  %v29 = vld [vmem:[%s2 + $0x30] sm:$0xff]
  %v30 = vld [vmem:[%s2 + $0x38] sm:$0xff]
  %v31 = vld [vmem:[%s2 + $0x40] sm:$0xf]
  %v32 = vld [vmem:[%s0] sm:$0xff]
  %v33 = vld [vmem:[%s0 + $0x10] sm:$0xff]
  %36 = vrot.lane.b32.xlu0 %v32, 104
  %v37 = vpop.permute.xlu0 %36
  %38 = vrot.lane.b32.xlu0 %v33, 104
  %v39 = vpop.permute.xlu0 %38
  %vm42 = vcmask 64512
  %43 = vst.msk [vmem:[#allocation2] sm:$0xff] %vm42, %v37
  %44 = vst.msk [vmem:[#allocation2 + $0x8] sm:$0xff] %vm42, %v39
  %v45 = vld [vmem:[%s0] sm:$0xff]
  %v46 = vld [vmem:[%s0 + $0x10] sm:$0xff]
  %49 = vrot.lane.b32.xlu0 %v45, 101
  %v50 = vpop.permute.xlu0 %49
  %51 = vrot.lane.b32.xlu0 %v46, 101
  %v52 = vpop.permute.xlu0 %51
  %vm55 = vcmask 130112
  %56 = vst.msk [vmem:[#allocation2] sm:$0xff] %vm55, %v50
  %57 = vst.msk [vmem:[#allocation2 + $0x8] sm:$0xff] %vm55, %v52
  %v58 = vld [vmem:[%s0] sm:$0xff]
  %v59 = vld [vmem:[%s0 + $0x10] sm:$0xff]
  %62 = vrot.lane.b32.xlu0 %v58, 98
  %v63 = vpop.permute.xlu0 %62
  %64 = vrot.lane.b32.xlu0 %v59, 98
  %v65 = vpop.permute.xlu0 %64
  %vm68 = vcmask 195712
  %69 = vst.msk [vmem:[#allocation2] sm:$0xff] %vm68, %v63
  %70 = vst.msk [vmem:[#allocation2 + $0x8] sm:$0xff] %vm68, %v65
  %v71 = vld [vmem:[%s0] sm:$0xff]
  %v72 = vld [vmem:[%s0 + $0x10] sm:$0xff]
  %75 = vrot.lane.b32.xlu0 %v71, 95
  %v76 = vpop.permute.xlu0 %75
  %77 = vrot.lane.b32.xlu0 %v72, 95
  %v78 = vpop.permute.xlu0 %77
  %vm81 = vcmask 261312
  %82 = vst.msk [vmem:[#allocation2] sm:$0xff] %vm81, %v76
  %83 = vst.msk [vmem:[#allocation2 + $0x8] sm:$0xff] %vm81, %v78
  %v84 = vld [vmem:[%s0] sm:$0xff]
  %v85 = vld [vmem:[%s0 + $0x10] sm:$0xff]
  %88 = vrot.lane.b32.xlu0 %v84, 92
  %v89 = vpop.permute.xlu0 %88
  %90 = vrot.lane.b32.xlu0 %v85, 92
  %v91 = vpop.permute.xlu0 %90
  %vm94 = vcmask 326912
  %95 = vst.msk [vmem:[#allocation2] sm:$0xff] %vm94, %v89
  %96 = vst.msk [vmem:[#allocation2 + $0x8] sm:$0xff] %vm94, %v91
  %v97 = vld [vmem:[%s0] sm:$0xff]
  %v98 = vld [vmem:[%s0 + $0x10] sm:$0xff]
  %101 = vrot.lane.b32.xlu0 %v97, 89
  %v102 = vpop.permute.xlu0 %101
  %103 = vrot.lane.b32.xlu0 %v98, 89
  %v104 = vpop.permute.xlu0 %103
  %vm107 = vcmask 392512
  %108 = vst.msk [vmem:[#allocation2] sm:$0xff] %vm107, %v102
  %109 = vst.msk [vmem:[#allocation2 + $0x8] sm:$0xff] %vm107, %v104
  %v110 = vld [vmem:[%s0] sm:$0xff]
  %v111 = vld [vmem:[%s0 + $0x10] sm:$0xff]
  %114 = vrot.lane.b32.xlu0 %v110, 86
  %v115 = vpop.permute.xlu0 %114
  %116 = vrot.lane.b32.xlu0 %v111, 86
  %v117 = vpop.permute.xlu0 %116
  %vm120 = vcmask 458112
  %121 = vst.msk [vmem:[#allocation2] sm:$0xff] %vm120, %v115
  %122 = vst.msk [vmem:[#allocation2 + $0x8] sm:$0xff] %vm120, %v117
  %v123 = vld [vmem:[%s0] sm:$0xff]
  %v124 = vld [vmem:[%s0 + $0x10] sm:$0xff]
  %127 = vrot.lane.b32.xlu0 %v123, 83
  %v128 = vpop.permute.xlu0 %127
  %129 = vrot.lane.b32.xlu0 %v124, 83
  %v130 = vpop.permute.xlu0 %129
  %vm133 = vcmask 523712
  %134 = vst.msk [vmem:[#allocation2] sm:$0xff] %vm133, %v128
  %135 = vst.msk [vmem:[#allocation2 + $0x8] sm:$0xff] %vm133, %v130
  %v136 = vld [vmem:[%s0] sm:$0xff]
  %v137 = vld [vmem:[%s0 + $0x10] sm:$0xff]
  %140 = vrot.lane.b32.xlu0 %v136, 80
  %v141 = vpop.permute.xlu0 %140
  %142 = vrot.lane.b32.xlu0 %v137, 80
  %v143 = vpop.permute.xlu0 %142
  %vm146 = vcmask 589312
  %147 = vst.msk [vmem:[#allocation2] sm:$0xff] %vm146, %v141
  %148 = vst.msk [vmem:[#allocation2 + $0x8] sm:$0xff] %vm146, %v143
  %v149 = vld [vmem:[%s0] sm:$0xff]
  %v150 = vld [vmem:[%s0 + $0x8] sm:$0xff]
  %v151 = vld [vmem:[%s0 + $0x10] sm:$0xff]
  %v152 = vld [vmem:[%s0 + $0x18] sm:$0xff]
  %157 = vrot.lane.b32.xlu0 %v149, 77
  %v158 = vpop.permute.xlu0 %157
  %159 = vrot.lane.b32.xlu0 %v150, 77
  %v160 = vpop.permute.xlu0 %159
  %161 = vrot.lane.b32.xlu0 %v151, 77
  %v162 = vpop.permute.xlu0 %161
  %163 = vrot.lane.b32.xlu0 %v152, 77
  %v164 = vpop.permute.xlu0 %163
  %vm165 = vcmask 629760
  %v166 = vsel %vm165, %v158, %v160
  %v167 = vsel %vm165, %v162, %v164
  %vm170 = vcmask 654912
  %171 = vst.msk [vmem:[#allocation2] sm:$0xff] %vm170, %v166
  %172 = vst.msk [vmem:[#allocation2 + $0x8] sm:$0xff] %vm170, %v167
  %v173 = vld [vmem:[%s0 + $0x8] sm:$0xff]
  %v174 = vld [vmem:[%s0 + $0x18] sm:$0xff]
  %177 = vrot.lane.b32.xlu0 %v173, 74
  %v178 = vpop.permute.xlu0 %177
  %179 = vrot.lane.b32.xlu0 %v174, 74
  %v180 = vpop.permute.xlu0 %179
  %vm183 = vcmask 720512
  %184 = vst.msk [vmem:[#allocation2] sm:$0xff] %vm183, %v178
  %185 = vst.msk [vmem:[#allocation2 + $0x8] sm:$0xff] %vm183, %v180
  %v186 = vld [vmem:[%s0 + $0x8] sm:$0xff]
  %v187 = vld [vmem:[%s0 + $0x18] sm:$0xff]
  %190 = vrot.lane.b32.xlu0 %v186, 71
  %v191 = vpop.permute.xlu0 %190
  %192 = vrot.lane.b32.xlu0 %v187, 71
  %v193 = vpop.permute.xlu0 %192
  %vm196 = vcmask 786112
  %197 = vst.msk [vmem:[#allocation2] sm:$0xff] %vm196, %v191
  %198 = vst.msk [vmem:[#allocation2 + $0x8] sm:$0xff] %vm196, %v193
  %v199 = vld [vmem:[%s0 + $0x8] sm:$0xff]
  %v200 = vld [vmem:[%s0 + $0x18] sm:$0xff]
  %203 = vrot.lane.b32.xlu0 %v199, 68
  %v204 = vpop.permute.xlu0 %203
  %205 = vrot.lane.b32.xlu0 %v200, 68
  %v206 = vpop.permute.xlu0 %205
  %vm209 = vcmask 851712
  %210 = vst.msk [vmem:[#allocation2] sm:$0xff] %vm209, %v204
  %211 = vst.msk [vmem:[#allocation2 + $0x8] sm:$0xff] %vm209, %v206
  %v212 = vld [vmem:[%s0 + $0x8] sm:$0xff]
  %v213 = vld [vmem:[%s0 + $0x18] sm:$0xff]
  %216 = vrot.lane.b32.xlu0 %v212, 65
  %v217 = vpop.permute.xlu0 %216
  %218 = vrot.lane.b32.xlu0 %v213, 65
  %v219 = vpop.permute.xlu0 %218
  %vm222 = vcmask 917312
  %223 = vst.msk [vmem:[#allocation2] sm:$0xff] %vm222, %v217
  %224 = vst.msk [vmem:[#allocation2 + $0x8] sm:$0xff] %vm222, %v219
  %v225 = vld [vmem:[%s0 + $0x8] sm:$0xff]
  %v226 = vld [vmem:[%s0 + $0x18] sm:$0xff]
  %229 = vrot.lane.b32.xlu0 %v225, 62
  %v230 = vpop.permute.xlu0 %229
  %231 = vrot.lane.b32.xlu0 %v226, 62
  %v232 = vpop.permute.xlu0 %231
  %vm235 = vcmask 982912
  %236 = vst.msk [vmem:[#allocation2] sm:$0xff] %vm235, %v230
  %237 = vst.msk [vmem:[#allocation2 + $0x8] sm:$0xff] %vm235, %v232
  %v238 = vld [vmem:[%s0 + $0x8] sm:$0xff]
  %v239 = vld [vmem:[%s0 + $0x18] sm:$0xff]
  %242 = vrot.lane.b32.xlu0 %v238, 59
  %v243 = vpop.permute.xlu0 %242
  %244 = vrot.lane.b32.xlu0 %v239, 59
  %v245 = vpop.permute.xlu0 %244
  %vm248 = vcmask 1048512
  %249 = vst.msk [vmem:[#allocation2] sm:$0xff] %vm248, %v243
  %250 = vst.msk [vmem:[#allocation2 + $0x8] sm:$0xff] %vm248, %v245
  %v251 = vld [vmem:[#allocation2] sm:$0xff]
  %v252 = vld [vmem:[#allocation2 + $0x8] sm:$0xff]
  %254 = vset.pattern.permute.xlu0 0
  %255 = vperm.xlu0 %254, %v23
  %v256 = vpop.permute.xlu0 %255
  %259 = vset.pattern.permute.xlu0 0
  %260 = vperm.xlu0 %259, %v24
  %v261 = vpop.permute.xlu0 %260
  %264 = vset.pattern.permute.xlu0 0
  %265 = vperm.xlu0 %264, %v25
  %v266 = vpop.permute.xlu0 %265
  %269 = vset.pattern.permute.xlu0 0
  %270 = vperm.xlu0 %269, %v26
  %v271 = vpop.permute.xlu0 %270
  %274 = vset.pattern.permute.xlu0 0
  %275 = vperm.xlu0 %274, %v27
  %v276 = vpop.permute.xlu0 %275
  %279 = vset.pattern.permute.xlu0 0
  %280 = vperm.xlu0 %279, %v28
  %v281 = vpop.permute.xlu0 %280
  %284 = vset.pattern.permute.xlu0 0
  %285 = vperm.xlu0 %284, %v29
  %v286 = vpop.permute.xlu0 %285
  %289 = vset.pattern.permute.xlu0 0
  %290 = vperm.xlu0 %289, %v30
  %v291 = vpop.permute.xlu0 %290
  %294 = vset.pattern.permute.xlu0 0
  %295 = vperm.xlu0 %294, %v31
  %v296 = vpop.permute.xlu0 %295
  %vm298 = vcmask 130048
  %v300 = vsel %vm298, %v14, 0
  %v303 = vsel %vm298, %v15, 0
  %v306 = vsel %vm298, %v16, 0
  %v309 = vsel %vm298, %v17, 0
  %v312 = vsel %vm298, %v18, 0
  %v315 = vsel %vm298, %v19, 0
  %v318 = vsel %vm298, %v20, 0
  %v321 = vsel %vm298, %v21, 0
  %v324 = vsel %vm298, %v22, 0
  %326 = vmatpush.msra.mxu0 0.0
  %327 = vmatpush.msra.mxu0 0.0
  %328 = vmatpush.msra.mxu0 0.0
  %329 = vmatpush.msra.mxu0 0.0
  %330 = vmatpush.msra.mxu0 0.0
  %331 = vmatpush.msra.mxu0 0.0
  %332 = vmatpush.msra.mxu0 0.0
  %333 = vmatpush.msra.mxu0 0.0
  %334 = vmatpush.msra.mxu0 0.0
  %335 = vmatpush.msra.mxu0 0.0
  %336 = vmatpush.msra.mxu0 0.0
  %337 = vmatpush.msra.mxu0 0.0
  %338 = vmatpush.msra.mxu0 0.0
  %339 = vmatpush.msra.mxu0 0.0
  %340 = vmatpush.msra.mxu0 %v252
  %341 = vmatpush.msra.mxu0 %v251
  %342 = vmatmul.f32.gmra.mxu0 %v300
  %v343 = vpop.f32.mrf.mxu0
  %v344 = vadd.f32 %v256, %v343
  %345 = vmatmul.f32.gmra.mxu0 %v303
  %v346 = vpop.f32.mrf.mxu0
  %v347 = vadd.f32 %v261, %v346
  %348 = vmatmul.f32.gmra.mxu0 %v306
  %v349 = vpop.f32.mrf.mxu0
  %v350 = vadd.f32 %v266, %v349
  %351 = vmatmul.f32.gmra.mxu0 %v309
  %v352 = vpop.f32.mrf.mxu0
  %v353 = vadd.f32 %v271, %v352
  %354 = vmatmul.f32.gmra.mxu0 %v312
  %v355 = vpop.f32.mrf.mxu0
  %v356 = vadd.f32 %v276, %v355
  %357 = vmatmul.f32.gmra.mxu0 %v315
  %v358 = vpop.f32.mrf.mxu0
  %v359 = vadd.f32 %v281, %v358
  %360 = vmatmul.f32.gmra.mxu0 %v318
  %v361 = vpop.f32.mrf.mxu0
  %v362 = vadd.f32 %v286, %v361
  %363 = vmatmul.f32.gmra.mxu0 %v321
  %v364 = vpop.f32.mrf.mxu0
  %v365 = vadd.f32 %v291, %v364
  %366 = vmatmul.f32.gmra.mxu0 %v324
  %v367 = vpop.f32.mrf.mxu0
  %v368 = vadd.f32 %v296, %v367
  %369 = vdwg.mxu0
  %v370 = vmul.f32 %v344, -0.3757
  %v371 = vmul.f32 %v347, -0.3757
  %v372 = vmul.f32 %v350, -0.3757
  %v373 = vmul.f32 %v353, -0.3757
  %v374 = vmul.f32 %v356, -0.3757
  %v375 = vmul.f32 %v359, -0.3757
  %v376 = vmul.f32 %v362, -0.3757
  %v377 = vmul.f32 %v365, -0.3757
  %v378 = vmul.f32 %v368, -0.3757
  %v379 = vmax.f32 %v344, %v370
  %v380 = vmax.f32 %v347, %v371
  %v381 = vmax.f32 %v350, %v372
  %v382 = vmax.f32 %v353, %v373
  %v383 = vmax.f32 %v356, %v374
  %v384 = vmax.f32 %v359, %v375
  %v385 = vmax.f32 %v362, %v376
  %v386 = vmax.f32 %v365, %v377
  %v387 = vmax.f32 %v368, %v378
  %388 = vst [vmem:[%s3] sm:$0xff] %v379
  %389 = vst [vmem:[%s3 + $0x8] sm:$0xff] %v380
  %390 = vst [vmem:[%s3 + $0x10] sm:$0xff] %v381
  %391 = vst [vmem:[%s3 + $0x18] sm:$0xff] %v382
  %392 = vst [vmem:[%s3 + $0x20] sm:$0xff] %v383
  %393 = vst [vmem:[%s3 + $0x28] sm:$0xff] %v384
  %394 = vst [vmem:[%s3 + $0x30] sm:$0xff] %v385
  %395 = vst [vmem:[%s3 + $0x38] sm:$0xff] %v386
  %396 = vst [vmem:[%s3 + $0x40] sm:$0xf] %v387
  %s397 = scalar_lea.vmem %s0, 32
  %v398 = vld [vmem:[%s397] sm:$0xff]
  %v399 = vld [vmem:[%s397 + $0x10] sm:$0xff]
  %402 = vrot.lane.b32.xlu0 %v398, 104
  %v403 = vpop.permute.xlu0 %402
  %404 = vrot.lane.b32.xlu0 %v399, 104
  %v405 = vpop.permute.xlu0 %404
  %s408 = scalar_lea.vmem [#allocation2], 16
  %409 = vst.msk [vmem:[%s408] sm:$0xff] %vm42, %v403
  %410 = vst.msk [vmem:[%s408 + $0x8] sm:$0xff] %vm42, %v405
  %v411 = vld [vmem:[%s397] sm:$0xff]
  %v412 = vld [vmem:[%s397 + $0x10] sm:$0xff]
  %415 = vrot.lane.b32.xlu0 %v411, 101
  %v416 = vpop.permute.xlu0 %415
  %417 = vrot.lane.b32.xlu0 %v412, 101
  %v418 = vpop.permute.xlu0 %417
  %421 = vst.msk [vmem:[%s408] sm:$0xff] %vm55, %v416
  %422 = vst.msk [vmem:[%s408 + $0x8] sm:$0xff] %vm55, %v418
  %v423 = vld [vmem:[%s397] sm:$0xff]
  %v424 = vld [vmem:[%s397 + $0x10] sm:$0xff]
  %427 = vrot.lane.b32.xlu0 %v423, 98
  %v428 = vpop.permute.xlu0 %427
  %429 = vrot.lane.b32.xlu0 %v424, 98
  %v430 = vpop.permute.xlu0 %429
  %433 = vst.msk [vmem:[%s408] sm:$0xff] %vm68, %v428
  %434 = vst.msk [vmem:[%s408 + $0x8] sm:$0xff] %vm68, %v430
  %v435 = vld [vmem:[%s397] sm:$0xff]
  %v436 = vld [vmem:[%s397 + $0x10] sm:$0xff]
  %439 = vrot.lane.b32.xlu0 %v435, 95
  %v440 = vpop.permute.xlu0 %439
  %441 = vrot.lane.b32.xlu0 %v436, 95
  %v442 = vpop.permute.xlu0 %441
  %445 = vst.msk [vmem:[%s408] sm:$0xff] %vm81, %v440
  %446 = vst.msk [vmem:[%s408 + $0x8] sm:$0xff] %vm81, %v442
  %v447 = vld [vmem:[%s397] sm:$0xff]
  %v448 = vld [vmem:[%s397 + $0x10] sm:$0xff]
  %451 = vrot.lane.b32.xlu0 %v447, 92
  %v452 = vpop.permute.xlu0 %451
  %453 = vrot.lane.b32.xlu0 %v448, 92
  %v454 = vpop.permute.xlu0 %453
  %457 = vst.msk [vmem:[%s408] sm:$0xff] %vm94, %v452
  %458 = vst.msk [vmem:[%s408 + $0x8] sm:$0xff] %vm94, %v454
  %v459 = vld [vmem:[%s397] sm:$0xff]
  %v460 = vld [vmem:[%s397 + $0x10] sm:$0xff]
  %463 = vrot.lane.b32.xlu0 %v459, 89
  %v464 = vpop.permute.xlu0 %463
  %465 = vrot.lane.b32.xlu0 %v460, 89
  %v466 = vpop.permute.xlu0 %465
  %469 = vst.msk [vmem:[%s408] sm:$0xff] %vm107, %v464
  %470 = vst.msk [vmem:[%s408 + $0x8] sm:$0xff] %vm107, %v466
  %v471 = vld [vmem:[%s397] sm:$0xff]
  %v472 = vld [vmem:[%s397 + $0x10] sm:$0xff]
  %475 = vrot.lane.b32.xlu0 %v471, 86
  %v476 = vpop.permute.xlu0 %475
  %477 = vrot.lane.b32.xlu0 %v472, 86
  %v478 = vpop.permute.xlu0 %477
  %481 = vst.msk [vmem:[%s408] sm:$0xff] %vm120, %v476
  %482 = vst.msk [vmem:[%s408 + $0x8] sm:$0xff] %vm120, %v478
  %v483 = vld [vmem:[%s397] sm:$0xff]
  %v484 = vld [vmem:[%s397 + $0x10] sm:$0xff]
  %487 = vrot.lane.b32.xlu0 %v483, 83
  %v488 = vpop.permute.xlu0 %487
  %489 = vrot.lane.b32.xlu0 %v484, 83
  %v490 = vpop.permute.xlu0 %489
  %493 = vst.msk [vmem:[%s408] sm:$0xff] %vm133, %v488
  %494 = vst.msk [vmem:[%s408 + $0x8] sm:$0xff] %vm133, %v490
  %v495 = vld [vmem:[%s397] sm:$0xff]
  %v496 = vld [vmem:[%s397 + $0x10] sm:$0xff]
  %499 = vrot.lane.b32.xlu0 %v495, 80
  %v500 = vpop.permute.xlu0 %499
  %501 = vrot.lane.b32.xlu0 %v496, 80
  %v502 = vpop.permute.xlu0 %501
  %505 = vst.msk [vmem:[%s408] sm:$0xff] %vm146, %v500
  %506 = vst.msk [vmem:[%s408 + $0x8] sm:$0xff] %vm146, %v502
  %v507 = vld [vmem:[%s397] sm:$0xff]
  %v508 = vld [vmem:[%s397 + $0x8] sm:$0xff]
  %v509 = vld [vmem:[%s397 + $0x10] sm:$0xff]
  %v510 = vld [vmem:[%s397 + $0x18] sm:$0xff]
  %515 = vrot.lane.b32.xlu0 %v507, 77
  %v516 = vpop.permute.xlu0 %515
  %517 = vrot.lane.b32.xlu0 %v508, 77
  %v518 = vpop.permute.xlu0 %517
  %519 = vrot.lane.b32.xlu0 %v509, 77
  %v520 = vpop.permute.xlu0 %519
  %521 = vrot.lane.b32.xlu0 %v510, 77
  %v522 = vpop.permute.xlu0 %521
  %v523 = vsel %vm165, %v516, %v518
  %v524 = vsel %vm165, %v520, %v522
  %527 = vst.msk [vmem:[%s408] sm:$0xff] %vm170, %v523
  %528 = vst.msk [vmem:[%s408 + $0x8] sm:$0xff] %vm170, %v524
  %v529 = vld [vmem:[%s397 + $0x8] sm:$0xff]
  %v530 = vld [vmem:[%s397 + $0x18] sm:$0xff]
  %533 = vrot.lane.b32.xlu0 %v529, 74
  %v534 = vpop.permute.xlu0 %533
  %535 = vrot.lane.b32.xlu0 %v530, 74
  %v536 = vpop.permute.xlu0 %535
  %539 = vst.msk [vmem:[%s408] sm:$0xff] %vm183, %v534
  %540 = vst.msk [vmem:[%s408 + $0x8] sm:$0xff] %vm183, %v536
  %v541 = vld [vmem:[%s397 + $0x8] sm:$0xff]
  %v542 = vld [vmem:[%s397 + $0x18] sm:$0xff]
  %545 = vrot.lane.b32.xlu0 %v541, 71
  %v546 = vpop.permute.xlu0 %545
  %547 = vrot.lane.b32.xlu0 %v542, 71
  %v548 = vpop.permute.xlu0 %547
  %551 = vst.msk [vmem:[%s408] sm:$0xff] %vm196, %v546
  %552 = vst.msk [vmem:[%s408 + $0x8] sm:$0xff] %vm196, %v548
  %v553 = vld [vmem:[%s397 + $0x8] sm:$0xff]
  %v554 = vld [vmem:[%s397 + $0x18] sm:$0xff]
  %557 = vrot.lane.b32.xlu0 %v553, 68
  %v558 = vpop.permute.xlu0 %557
  %559 = vrot.lane.b32.xlu0 %v554, 68
  %v560 = vpop.permute.xlu0 %559
  %563 = vst.msk [vmem:[%s408] sm:$0xff] %vm209, %v558
  %564 = vst.msk [vmem:[%s408 + $0x8] sm:$0xff] %vm209, %v560
  %v565 = vld [vmem:[%s397 + $0x8] sm:$0xff]
  %v566 = vld [vmem:[%s397 + $0x18] sm:$0xff]
  %569 = vrot.lane.b32.xlu0 %v565, 65
  %v570 = vpop.permute.xlu0 %569
  %571 = vrot.lane.b32.xlu0 %v566, 65
  %v572 = vpop.permute.xlu0 %571
  %575 = vst.msk [vmem:[%s408] sm:$0xff] %vm222, %v570
  %576 = vst.msk [vmem:[%s408 + $0x8] sm:$0xff] %vm222, %v572
  %v577 = vld [vmem:[%s397 + $0x8] sm:$0xff]
  %v578 = vld [vmem:[%s397 + $0x18] sm:$0xff]
  %581 = vrot.lane.b32.xlu0 %v577, 62
  %v582 = vpop.permute.xlu0 %581
  %583 = vrot.lane.b32.xlu0 %v578, 62
  %v584 = vpop.permute.xlu0 %583
  %587 = vst.msk [vmem:[%s408] sm:$0xff] %vm235, %v582
  %588 = vst.msk [vmem:[%s408 + $0x8] sm:$0xff] %vm235, %v584
  %v589 = vld [vmem:[%s397 + $0x8] sm:$0xff]
  %v590 = vld [vmem:[%s397 + $0x18] sm:$0xff]
  %593 = vrot.lane.b32.xlu0 %v589, 59
  %v594 = vpop.permute.xlu0 %593
  %595 = vrot.lane.b32.xlu0 %v590, 59
  %v596 = vpop.permute.xlu0 %595
  %599 = vst.msk [vmem:[%s408] sm:$0xff] %vm248, %v594
  %600 = vst.msk [vmem:[%s408 + $0x8] sm:$0xff] %vm248, %v596
  %v601 = vld [vmem:[%s408] sm:$0xff]
  %v602 = vld [vmem:[%s408 + $0x8] sm:$0xff]
  %603 = vmatpush.msra.mxu0 0.0
  %604 = vmatpush.msra.mxu0 0.0
  %605 = vmatpush.msra.mxu0 0.0
  %606 = vmatpush.msra.mxu0 0.0
  %607 = vmatpush.msra.mxu0 0.0
  %608 = vmatpush.msra.mxu0 0.0
  %609 = vmatpush.msra.mxu0 0.0
  %610 = vmatpush.msra.mxu0 0.0
  %611 = vmatpush.msra.mxu0 0.0
  %612 = vmatpush.msra.mxu0 0.0
  %613 = vmatpush.msra.mxu0 0.0
  %614 = vmatpush.msra.mxu0 0.0
  %615 = vmatpush.msra.mxu0 0.0
  %616 = vmatpush.msra.mxu0 0.0
  %617 = vmatpush.msra.mxu0 %v602
  %618 = vmatpush.msra.mxu0 %v601
  %619 = vmatmul.f32.gmra.mxu0 %v300
  %v620 = vpop.f32.mrf.mxu0
  %v621 = vadd.f32 %v256, %v620
  %622 = vmatmul.f32.gmra.mxu0 %v303
  %v623 = vpop.f32.mrf.mxu0
  %v624 = vadd.f32 %v261, %v623
  %625 = vmatmul.f32.gmra.mxu0 %v306
  %v626 = vpop.f32.mrf.mxu0
  %v627 = vadd.f32 %v266, %v626
  %628 = vmatmul.f32.gmra.mxu0 %v309
  %v629 = vpop.f32.mrf.mxu0
  %v630 = vadd.f32 %v271, %v629
  %631 = vmatmul.f32.gmra.mxu0 %v312
  %v632 = vpop.f32.mrf.mxu0
  %v633 = vadd.f32 %v276, %v632
  %634 = vmatmul.f32.gmra.mxu0 %v315
  %v635 = vpop.f32.mrf.mxu0
  %v636 = vadd.f32 %v281, %v635
  %637 = vmatmul.f32.gmra.mxu0 %v318
  %v638 = vpop.f32.mrf.mxu0
  %v639 = vadd.f32 %v286, %v638
  %640 = vmatmul.f32.gmra.mxu0 %v321
  %v641 = vpop.f32.mrf.mxu0
  %v642 = vadd.f32 %v291, %v641
  %643 = vmatmul.f32.gmra.mxu0 %v324
  %v644 = vpop.f32.mrf.mxu0
  %v645 = vadd.f32 %v296, %v644
  %646 = vdwg.mxu0
  %v647 = vmul.f32 %v621, -0.3757
  %v648 = vmul.f32 %v624, -0.3757
  %v649 = vmul.f32 %v627, -0.3757
  %v650 = vmul.f32 %v630, -0.3757
  %v651 = vmul.f32 %v633, -0.3757
  %v652 = vmul.f32 %v636, -0.3757
  %v653 = vmul.f32 %v639, -0.3757
  %v654 = vmul.f32 %v642, -0.3757
  %v655 = vmul.f32 %v645, -0.3757
  %v656 = vmax.f32 %v621, %v647
  %v657 = vmax.f32 %v624, %v648
  %v658 = vmax.f32 %v627, %v649
  %v659 = vmax.f32 %v630, %v650
  %v660 = vmax.f32 %v633, %v651
  %v661 = vmax.f32 %v636, %v652
  %v662 = vmax.f32 %v639, %v653
  %v663 = vmax.f32 %v642, %v654
  %v664 = vmax.f32 %v645, %v655
  %s665 = scalar_lea.vmem %s3, 72
  %666 = vst [vmem:[%s665] sm:$0xff] %v656
  %667 = vst [vmem:[%s665 + $0x8] sm:$0xff] %v657
  %668 = vst [vmem:[%s665 + $0x10] sm:$0xff] %v658
  %669 = vst [vmem:[%s665 + $0x18] sm:$0xff] %v659
  %670 = vst [vmem:[%s665 + $0x20] sm:$0xff] %v660
  %671 = vst [vmem:[%s665 + $0x28] sm:$0xff] %v661
  %672 = vst [vmem:[%s665 + $0x30] sm:$0xff] %v662
  %673 = vst [vmem:[%s665 + $0x38] sm:$0xff] %v663
  %674 = vst [vmem:[%s665 + $0x40] sm:$0xf] %v664
  // Predicated region
  $region14: #{model_forward.1} parent=0 // pred_check
    _
  $region15: #{model_forward.1} parent=0 // pred_check_branch
    %676 = sbr.rel (0) target = $region17
  $region16: #{model_forward.1} parent=0 // pred_region
    _
  $region17: #{model_forward.1} parent=0 // pred_fallthru
    _
  // Predicated region
  $region18: #{model_forward.1} parent=0 // pred_check
    _
  $region19: #{model_forward.1} parent=0 // pred_check_branch
    %678 = sbr.rel (0) target = $region21
  $region20: #{model_forward.1} parent=0 // pred_region
    _
  $region21: #{model_forward.1} parent=0 // pred_fallthru
    _

</llo_original>
